<compile_context>
chip_gen: v7x
topology: tpu7x:2x2x1
jax: 0.10.0
libtpu: 0.0.40
codegen_flags: <defaults>
</compile_context>

<pallas_src>
import jax
import jax.numpy as jnp
from jax.experimental import pallas as pl
from jax.experimental.pallas import tpu as pltpu

LANE = 128                    # TPU vreg lane width
TM, TN, TK = 128, 128, 256    # tiles for the large path (fits v5e/v6e/v7x)


def _round_up(x, m):
    return (x + m - 1) // m * m


# ---------------------------------------------------------------------------
# Small-problem path: all operands resident in VMEM, single kernel invocation,
# no grid, no pipeline machinery.
# ---------------------------------------------------------------------------
def _linear_whole_kernel(x_ref, w_ref, b_ref, o_ref):
    # x: (B, K), w: (K, Np) pre-transposed, b: (1, Np), o: (B, Np)
    acc = jnp.dot(x_ref[...], w_ref[...], preferred_element_type=jnp.float32)
    o_ref[...] = (acc + b_ref[...]).astype(o_ref.dtype)


def _linear_whole(x, w_kn, b_1n):
    B, _ = x.shape
    Np = w_kn.shape[1]
    vmem = pltpu.MemorySpace.VMEM
    return pl.pallas_call(
        _linear_whole_kernel,
        out_shape=jax.ShapeDtypeStruct((B, Np), x.dtype),
        in_specs=[
            pl.BlockSpec(memory_space=vmem),
            pl.BlockSpec(memory_space=vmem),
            pl.BlockSpec(memory_space=vmem),
        ],
        out_specs=pl.BlockSpec(memory_space=vmem),
    )(x, w_kn, b_1n)


# ---------------------------------------------------------------------------
# Tiled path for larger, tile-aligned problems: K-reduction with accumulator.
# ---------------------------------------------------------------------------
def _linear_tiled_kernel(x_ref, w_ref, b_ref, o_ref, acc_ref):
    k = pl.program_id(2)

    @pl.when(k == 0)
    def _():
        acc_ref[...] = jnp.zeros_like(acc_ref)

    # NOTE: for production-sized layers on v6e/v7x, casting x/w to bf16 here
    # (keeping the f32 accumulator) roughly doubles MXU throughput.
    acc_ref[...] += jnp.dot(x_ref[...], w_ref[...],
                            preferred_element_type=jnp.float32)

    @pl.when(k == pl.num_programs(2) - 1)
    def _():
        # Bias added once, on the final K step only.
        o_ref[...] = (acc_ref[...] + b_ref[...]).astype(o_ref.dtype)


def _linear_tiled(x, w_kn, b_1n):
    M, K = x.shape
    Np = w_kn.shape[1]
    grid = (M // TM, Np // TN, K // TK)
    return pl.pallas_call(
        _linear_tiled_kernel,
        out_shape=jax.ShapeDtypeStruct((M, Np), x.dtype),
        grid=grid,
        in_specs=[
            pl.BlockSpec((TM, TK), lambda i, j, k: (i, k)),
            pl.BlockSpec((TK, TN), lambda i, j, k: (k, j)),
            pl.BlockSpec((1, TN), lambda i, j, k: (0, j)),
        ],
        out_specs=pl.BlockSpec((TM, TN), lambda i, j, k: (i, j)),
        scratch_shapes=[pltpu.VMEM((TM, TN), jnp.float32)],
        compiler_params=pltpu.CompilerParams(
            dimension_semantics=("parallel", "parallel", "arbitrary")),
    )(x, w_kn, b_1n)


def _linear_forward(x, w_kn, b_1n):
    B, K = x.shape
    Np = w_kn.shape[1]
    if B % TM == 0 and Np % TN == 0 and K % TK == 0:
        return _linear_tiled(x, w_kn, b_1n)
    # Whole-array fast path — only when everything comfortably fits VMEM.
    nbytes = 4 * (B * K + K * Np + Np + B * Np)
    if nbytes > 24 * 1024 * 1024:
        # TODO(synk): pad B/K up to tile multiples and route through the tiled path.
        raise NotImplementedError("large non-tile-aligned shapes not supported")
    return _linear_whole(x, w_kn, b_1n)


class PallasLinear:
    """Pallas equivalent of MyModel (nn.Linear(in_feature, out_feature))."""

    def __init__(self, weight, bias):
        # weight: (out_feature, in_feature) PyTorch layout; bias: (out_feature,)
        n_out, _ = weight.shape
        n_pad = _round_up(n_out, LANE)
        # One-time parameter preprocessing (weights are static):
        #   * transpose to (K, N) so the kernel runs a plain NN MXU matmul with
        #     no per-call transpose HLO,
        #   * pad N to a multiple of 128 so kernel stores are lane-dense.
        self.w_kn = jnp.pad(weight.T, ((0, 0), (0, n_pad - n_out)))
        self.b_1n = jnp.pad(bias, (0, n_pad - n_out)).reshape(1, n_pad)
        self.n_out = n_out

    def __call__(self, x):
        y = _linear_forward(x, self.w_kn, self.b_1n)
        return y if y.shape[1] == self.n_out else y[:, : self.n_out]


if __name__ == "__main__":
    key = jax.random.PRNGKey(0)
    k_small, k_large = jax.random.split(key)

    # --- Small case (module-sized; exercises the whole-in-VMEM path) --------
    in_feature, out_feature, batch = 32, 64, 8
    kx, kw, kb = jax.random.split(k_small, 3)
    bound = 1.0 / float(in_feature) ** 0.5
    x = jax.random.normal(kx, (batch, in_feature), dtype=jnp.float32)
    weight = jax.random.uniform(kw, (out_feature, in_feature),
                                dtype=jnp.float32, minval=-bound, maxval=bound)
    bias = jax.random.uniform(kb, (out_feature,),
                              dtype=jnp.float32, minval=-bound, maxval=bound)

    model = PallasLinear(weight, bias)
    y = model(x)
    jax.block_until_ready(y)
    y_ref = x @ weight.T + bias
    assert y.shape == (batch, out_feature)
    assert jnp.allclose(y, y_ref, atol=1e-5, rtol=1e-5)

    # --- Larger tile-aligned case (exercises the tiled K-reduction path) ----
    in2, out2, batch2 = 512, 256, 256
    kx2, kw2, kb2 = jax.random.split(k_large, 3)
    bound2 = 1.0 / float(in2) ** 0.5
    x2 = jax.random.normal(kx2, (batch2, in2), dtype=jnp.float32)
    weight2 = jax.random.uniform(kw2, (out2, in2),
                                 dtype=jnp.float32, minval=-bound2, maxval=bound2)
    bias2 = jax.random.uniform(kb2, (out2,),
                               dtype=jnp.float32, minval=-bound2, maxval=bound2)

    model2 = PallasLinear(weight2, bias2)
    y2 = model2(x2)
    jax.block_until_ready(y2)
    y2_ref = x2 @ weight2.T + bias2
    assert y2.shape == (batch2, out2)
    assert jnp.allclose(y2, y2_ref, atol=2e-2, rtol=2e-2)

    print("KERNEL_OK")
</pallas_src>

<mosaic_0001>
module attributes {stable_mosaic.version = 11 : i64} {
  func.func @_linear_whole_kernel(%arg0: memref<8x32xf32, #tpu.memory_space<vmem>>, %arg1: memref<32x128xf32, #tpu.memory_space<vmem>>, %arg2: memref<1x128xf32, #tpu.memory_space<vmem>>, %arg3: memref<8x128xf32, #tpu.memory_space<vmem>>) attributes {dimension_semantics = [], scalar_prefetch = 0 : i64, scratch_operands = 0 : i64, tpu.core_type = #tpu.core_type<tc>} {
    %c0 = arith.constant 0 : index
    %c0_0 = arith.constant 0 : index
    %0 = vector.load %arg0[%c0, %c0_0] : memref<8x32xf32, #tpu.memory_space<vmem>>, vector<8x32xf32>
    %c0_1 = arith.constant 0 : index
    %c0_2 = arith.constant 0 : index
    %1 = vector.load %arg1[%c0_1, %c0_2] : memref<32x128xf32, #tpu.memory_space<vmem>>, vector<32x128xf32>
    %cst = arith.constant dense<0.000000e+00> : vector<8x128xf32>
    %2 = tpu.matmul %0, %1, %cst {dimension_numbers = #tpu.dot_dimension_numbers<[1], [0], [0], [1], [0, 0, 1, 1], [], []>} : vector<8x32xf32>, vector<32x128xf32>, vector<8x128xf32> -> vector<8x128xf32>
    %c0_3 = arith.constant 0 : index
    %c0_4 = arith.constant 0 : index
    %3 = vector.load %arg2[%c0_3, %c0_4] : memref<1x128xf32, #tpu.memory_space<vmem>>, vector<1x128xf32>
    %4 = vector.broadcast %3 : vector<1x128xf32> to vector<8x128xf32>
    %5 = arith.addf %2, %4 : vector<8x128xf32>
    %c0_5 = arith.constant 0 : index
    %c0_6 = arith.constant 0 : index
    %6 = vector.load %arg3[%c0_5, %c0_6] : memref<8x128xf32, #tpu.memory_space<vmem>>, vector<8x128xf32>
    tpu.vector_store %arg3[%c0_5, %c0_6], %5 {strides = array<i32>} : memref<8x128xf32, #tpu.memory_space<vmem>>, vector<8x128xf32>,
    return
  }
}

</mosaic_0001>

<llo_original>
// kernel: tpu_custom_call.1
$region0: #{tpu_custom_call.1}
  #allocation0 [shape = 'u32[]', space=smem, size = 0x4, offset = 0x4, fixed_abs, tag = 'smem constant byte address 0x4 - core index']
  #allocation1 [shape = 'u32[144,128]{1,0:T(1,128)}', space=vmem, size = 0x12000, scoped, tag = 'internal scratch']
  %s0 = inlined_call_operand.hbm [shape: f32[8,32], index: 0, kind: input, shape index: {}]
  %s1 = inlined_call_operand.hbm [shape: f32[32,128], index: 1, kind: input, shape index: {}]
  %s2 = inlined_call_operand.vmem [shape: f32[1,128], index: 2, kind: input, shape index: {}]
  %s3 = inlined_call_operand.hbm [shape: f32[8,128], index: 3, kind: output, shape index: {}]
  %s4 = sld [smem:[#allocation0]]
  $region30: #{tpu_custom_call.1} parent=0
    _
  %s6 = ssub.s32 1, %s4
  %s7 = scalar_select 0, %s6, %s4
  $region1: #{tpu_custom_call.1} parent=0
    #allocation2 [shape = 'u8[4096]{0}', space=vmem, size = 0x1000, scoped, tag = 'input window, operand 0, single buffered']
    #allocation3 [shape = 's32[1]{0}', space=sflag, size = 0x4, scoped, tag = 'scoped memory for tpu_custom_call.1']
    #allocation4 [shape = 's32[1]{0}', space=sflag, size = 0x4, scoped, tag = 'scoped memory for tpu_custom_call.1']
    #allocation5 [shape = 'u8[16384]{0}', space=vmem, size = 0x4000, scoped, tag = 'input window, operand 1, single buffered']
    #allocation6 [shape = 's32[1]{0}', space=sflag, size = 0x4, scoped, tag = 'scoped memory for tpu_custom_call.1']
    #allocation7 [shape = 'u8[4096]{0}', space=vmem, size = 0x1000, scoped, tag = 'output window, operand 0, single buffered']
    %8 = vsyncpa [#allocation3], 0
    %9 = vsyncpa [#allocation6], 0
    %10 = vsyncpa [#allocation4], 0
    // Predicated region
    $region2: #{tpu_custom_call.1} parent=1 // pred_check
      _
    $region3: #{tpu_custom_call.1} parent=1 // pred_check_branch
      %12 = sbr.rel (0) target = $region5
    $region4: #{tpu_custom_call.1} parent=1 // pred_region
      %s14 = ssub.s32 128, 128
      %15 = vsyncadd [#allocation3], %s14
      %s17 = sshll.u32 [#allocation2], 4
      %s18 = int_to_ptr.vmem [resolvable:$true] %s17
      %20 = dma.hbm_to_vmem [thread:$0]  %s0, 128, %s18, [#allocation3]
    $region5: #{tpu_custom_call.1} parent=1 // pred_fallthru
      _
    // Predicated region
    $region6: #{tpu_custom_call.1} parent=1 // pred_check
      _
    $region7: #{tpu_custom_call.1} parent=1 // pred_check_branch
      %22 = sbr.rel (0) target = $region9
    $region8: #{tpu_custom_call.1} parent=1 // pred_region
      %s24 = ssub.s32 512, 512
      %25 = vsyncadd [#allocation6], %s24
      %s26 = sshll.u32 [#allocation5], 4
      %s27 = int_to_ptr.vmem [resolvable:$true] %s26
      %32 = dma.hbm_to_vmem [thread:$0]  %s1, 512, %s27, [#allocation6], 128, 128, 8
    $region9: #{tpu_custom_call.1} parent=1 // pred_fallthru
      _
    // Predicated region
    $region10: #{tpu_custom_call.1} parent=1 // pred_check
      _
    $region11: #{tpu_custom_call.1} parent=1 // pred_check_branch
      %34 = sbr.rel (0) target = $region13
    $region12: #{tpu_custom_call.1} parent=1 // pred_region
      _
    $region13: #{tpu_custom_call.1} parent=1 // pred_fallthru
      _
    // Predicated region
    $region14: #{tpu_custom_call.1} parent=1 // pred_check
      _
    $region15: #{tpu_custom_call.1} parent=1 // pred_check_branch
      %36 = sbr.rel (0) target = $region17
    $region16: #{tpu_custom_call.1} parent=1 // pred_region
      %37 = dma.done [#allocation3], 128
    $region17: #{tpu_custom_call.1} parent=1 // pred_fallthru
      _
    // Predicated region
    $region18: #{tpu_custom_call.1} parent=1 // pred_check
      _
    $region19: #{tpu_custom_call.1} parent=1 // pred_check_branch
      %39 = sbr.rel (0) target = $region21
    $region20: #{tpu_custom_call.1} parent=1 // pred_region
      %40 = dma.done [#allocation6], 512
    $region21: #{tpu_custom_call.1} parent=1 // pred_fallthru
      _
    %v41 = vld [vmem:[#allocation2] sm:$0xff]
    %v42 = vld [vmem:[#allocation5] sm:$0xff]
    %v43 = vld [vmem:[#allocation5 + $0x8] sm:$0xff]
    %v44 = vld [vmem:[#allocation5 + $0x10] sm:$0xff]
    %v45 = vld [vmem:[#allocation5 + $0x18] sm:$0xff]
    %v46 = vld [vmem:[%s2] sm:$0x1]
    %v48 = vlaneseq
    %v49 = vshrl.u32 %v48, 7
    %v50 = vsub.s32 0, %v49
    %v51 = vrot.slane %v46, %v50
    %vm53 = vcmask 261120
    %v55 = vsel %vm53, %v41, 0
    %57 = vmatprep.subr.mxu0 0.0
    %58 = vmatpush1.msra.mxu0 %v42
    %59 = vmatprep.subr.mxu0 0.0
    %60 = vmatpush1.msra.mxu0 %v43
    %61 = vmatprep.subr.mxu0 0.0
    %62 = vmatpush1.msra.mxu0 %v44
    %63 = vmatprep.subr.mxu0 0.0
    %64 = vmatpush1.msra.mxu0 %v45
    %65 = vmatprep.subr.mxu0 0.0
    %66 = vmatpush1.msra.mxu0 0.0
    %67 = vmatprep.subr.mxu0 0.0
    %68 = vmatpush1.msra.mxu0 0.0
    %69 = vmatprep.subr.mxu0 0.0
    %70 = vmatpush1.msra.mxu0 0.0
    %71 = vmatprep.subr.mxu0 0.0
    %72 = vmatpush1.msra.mxu0 0.0
    %73 = vmatprep.subr.mxu0 0.0
    %74 = vmatpush1.msra.mxu0 0.0
    %75 = vmatprep.subr.mxu0 0.0
    %76 = vmatpush1.msra.mxu0 0.0
    %77 = vmatprep.subr.mxu0 0.0
    %78 = vmatpush1.msra.mxu0 0.0
    %79 = vmatprep.subr.mxu0 0.0
    %80 = vmatpush1.msra.mxu0 0.0
    %81 = vmatprep.subr.mxu0 0.0
    %82 = vmatpush1.msra.mxu0 0.0
    %83 = vmatprep.subr.mxu0 0.0
    %84 = vmatpush1.msra.mxu0 0.0
    %85 = vmatprep.subr.mxu0 0.0
    %86 = vmatpush1.msra.mxu0 0.0
    %87 = vmatprep.subr.mxu0 0.0
    %88 = vmatpush1.msra.mxu0 0.0
    %89 = vmatprep.subr.mxu0 0.0
    %90 = vmatpush1.msra.mxu0 0.0
    %91 = vmatprep.subr.mxu0 0.0
    %92 = vmatpush1.msra.mxu0 0.0
    %93 = vmatprep.subr.mxu0 0.0
    %94 = vmatpush1.msra.mxu0 0.0
    %95 = vmatprep.subr.mxu0 0.0
    %96 = vmatpush1.msra.mxu0 0.0
    %97 = vmatprep.subr.mxu0 0.0
    %98 = vmatpush1.msra.mxu0 0.0
    %99 = vmatprep.subr.mxu0 0.0
    %100 = vmatpush1.msra.mxu0 0.0
    %101 = vmatprep.subr.mxu0 0.0
    %102 = vmatpush1.msra.mxu0 0.0
    %103 = vmatprep.subr.mxu0 0.0
    %104 = vmatpush1.msra.mxu0 0.0
    %105 = vmatprep.subr.mxu0 0.0
    %106 = vmatpush1.msra.mxu0 0.0
    %107 = vmatprep.subr.mxu0 0.0
    %108 = vmatpush1.msra.mxu0 0.0
    %109 = vmatprep.subr.mxu0 0.0
    %110 = vmatpush1.msra.mxu0 0.0
    %111 = vmatprep.subr.mxu0 0.0
    %112 = vmatpush1.msra.mxu0 0.0
    %113 = vmatprep.subr.mxu0 0.0
    %114 = vmatpush1.msra.mxu0 0.0
    %115 = vmatprep.subr.mxu0 0.0
    %116 = vmatpush1.msra.mxu0 0.0
    %117 = vmatprep.subr.mxu0 0.0
    %118 = vmatpush1.msra.mxu0 0.0
    %119 = vmatprep.subr.mxu0 0.0
    %120 = vmatpush1.msra.mxu0 0.0
    %121 = vmatprep.mubr.f32.mxu0 0.0
    %122 = vmatmul.mubr.f32.gmra.mrb[0].mxu0 %v55
    %v123 = vpop.f32.mrb[0].mxu0
    %v124 = vadd.f32 %v51, %v123
    %v125 = vpop.f32.mrb[0].mxu0
    %126 = vdwg.mxu0
    %127 = vst [vmem:[#allocation7] sm:$0xff] %v124
    // Predicated region
    $region22: #{tpu_custom_call.1} parent=1 // pred_check
      _
    $region23: #{tpu_custom_call.1} parent=1 // pred_check_branch
      %129 = sbr.rel (0) target = $region25
    $region24: #{tpu_custom_call.1} parent=1 // pred_region
      %s131 = ssub.s32 128, 128
      %132 = vsyncadd [#allocation4], %s131
      %s134 = sshll.u32 [#allocation7], 4
      %s135 = int_to_ptr.vmem [resolvable:$true] %s134
      %137 = dma.vmem_to_hbm [thread:$0]  %s135, 128, %s3, [#allocation4]
    $region25: #{tpu_custom_call.1} parent=1 // pred_fallthru
      _
    // Predicated region
    $region26: #{tpu_custom_call.1} parent=1 // pred_check
      _
    $region27: #{tpu_custom_call.1} parent=1 // pred_check_branch
      %139 = sbr.rel (0) target = $region29
    $region28: #{tpu_custom_call.1} parent=1 // pred_region
      %140 = dma.done [#allocation4], 128
    $region29: #{tpu_custom_call.1} parent=1 // pred_fallthru
      _
    %141 = vsyncpa [#allocation3], 1
    %142 = vsyncpa [#allocation6], 1
    %143 = vsyncpa [#allocation4], 1

</llo_original>
